<compile_context>
chip_gen: v7x
topology: tpu7x:2x2x1
jax: 0.10.0
libtpu: 0.0.40
codegen_flags: <defaults>
</compile_context>

<pallas_src>
import jax
import jax.numpy as jnp
from jax.experimental import pallas as pl
from jax.experimental.pallas import tpu as pltpu

# Model dims (Iris: 4 features -> 32 -> 64 -> 3 classes).
IN_F, H1, H2, N_CLASSES = 4, 32, 64, 3
LANE = 128

# Row offsets of each parameter inside the packed (SLAB_ROWS, LANE) slab.
# Every piece starts on an 8-row (sublane-tile) boundary.
W1_R = 0      # (4, 32)    rows 0..3
B1_R = 8      # (1, 32)    row 8
W2_R = 16     # (32, 64)   rows 16..47
B2_R = 48     # (1, 64)    row 48
W3_R = 56     # (64, 128)  rows 56..119  (cols 3..127 are zero padding)
B3_R = 120    # (1, 128)   row 120       (cols 3..127 hold -1e30 mask)
SLAB_ROWS = 128

_NEG = -1e30  # effectively -inf after exp(), but finite (no NaN/inf paths)


def ann_kernel(x_ref, p_ref, o_ref):
    x = x_ref[...]                               # (TB, IN_F) f32

    # Static views into the packed parameter slab (resident in VMEM).
    w1 = p_ref[W1_R:W1_R + IN_F, :H1]            # (4, 32)
    b1 = p_ref[B1_R:B1_R + 1, :H1]               # (1, 32)
    w2 = p_ref[W2_R:W2_R + H1, :H2]              # (32, 64)
    b2 = p_ref[B2_R:B2_R + 1, :H2]               # (1, 64)
    w3 = p_ref[W3_R:W3_R + H2, :]                # (64, 128), lane-padded
    b3 = p_ref[B3_R:B3_R + 1, :]                 # (1, 128), -1e30 in pad lanes

    bf16 = jnp.bfloat16

    # fc1 + relu (bf16 MXU operands, f32 accumulation, f32 bias)
    h1 = jnp.dot(x.astype(bf16), w1.astype(bf16),
                 preferred_element_type=jnp.float32) + b1
    h1 = jnp.maximum(h1, 0.0)

    # fc2 + relu
    h2 = jnp.dot(h1.astype(bf16), w2.astype(bf16),
                 preferred_element_type=jnp.float32) + b2
    h2 = jnp.maximum(h2, 0.0)

    # fc3, lane-dense (TB, 128).  Padded class lanes come out at -1e30
    # (zero weight columns + -1e30 bias) so softmax assigns them exactly 0.
    logits = jnp.dot(h2.astype(bf16), w3.astype(bf16),
                     preferred_element_type=jnp.float32) + b3

    m = jnp.max(logits, axis=-1, keepdims=True)
    e = jnp.exp(logits - m)
    denom = jnp.sum(e, axis=-1, keepdims=True)
    # Divide on the EUP; approx=False keeps parity with the reference softmax.
    o_ref[...] = (e * pl.reciprocal(denom, approx=False)).astype(o_ref.dtype)


def _round_up(n, m):
    return ((n + m - 1) // m) * m


def ann_forward(x, param_slab, *, block_b=1024):
    """x: (B, 4) f32, param_slab: (128, 128) f32 from pack_params()."""
    B = x.shape[0]
    # Batch tile: multiple of 8, capped at block_b.
    # VMEM budget (double-buffered x + padded out blocks) at block_b=1024:
    #   2*(1024*4 + 1024*128)*4 B ~= 1.0 MiB + 64 KiB slab -> fine even on
    #   v7x's 64 MiB VMEM; re-check if hidden dims or block_b grow.
    tb = min(block_b, _round_up(B, 8))
    tb = _round_up(tb, 8)
    bp = _round_up(B, tb)
    if bp != B:
        x = jnp.pad(x, ((0, bp - B), (0, 0)))

    out = pl.pallas_call(
        ann_kernel,
        out_shape=jax.ShapeDtypeStruct((bp, LANE), jnp.float32),
        grid=(bp // tb,),
        in_specs=[
            pl.BlockSpec((tb, IN_F), lambda i: (i, 0)),         # batch tile
            pl.BlockSpec((SLAB_ROWS, LANE), lambda i: (0, 0)),  # resident slab
        ],
        out_specs=pl.BlockSpec((tb, LANE), lambda i: (i, 0)),
        compiler_params=pltpu.CompilerParams(
            dimension_semantics=("parallel",)),
    )(x, param_slab)

    return out[:B, :N_CLASSES]


def pack_params(w1, b1, w2, b2, w3, b3):
    """Pack all parameters into a single (128, 128) f32 slab (one DMA)."""
    slab = jnp.zeros((SLAB_ROWS, LANE), jnp.float32)
    slab = slab.at[W1_R:W1_R + IN_F, :H1].set(w1)
    slab = slab.at[B1_R, :H1].set(b1)
    slab = slab.at[W2_R:W2_R + H1, :H2].set(w2)
    slab = slab.at[B2_R, :H2].set(b2)
    slab = slab.at[W3_R:W3_R + H2, :N_CLASSES].set(w3)
    slab = slab.at[B3_R, :N_CLASSES].set(b3)
    slab = slab.at[B3_R, N_CLASSES:].set(_NEG)   # kill padded class lanes
    return slab


def init_params(key):
    """Torch-style Linear init (uniform +-1/sqrt(fan_in)); weights stored
    transposed as (in, out), biases as (out,)."""
    ks = jax.random.split(key, 6)

    def lin(kw, kb, fan_in, fan_out):
        bound = 1.0 / float(fan_in) ** 0.5
        w = jax.random.uniform(kw, (fan_in, fan_out), jnp.float32, -bound, bound)
        b = jax.random.uniform(kb, (fan_out,), jnp.float32, -bound, bound)
        return w, b

    w1, b1 = lin(ks[0], ks[1], IN_F, H1)
    w2, b2 = lin(ks[2], ks[3], H1, H2)
    w3, b3 = lin(ks[4], ks[5], H2, N_CLASSES)
    return (w1, b1, w2, b2, w3, b3)


def ann_reference(x, params):
    """Pure-JAX f32 reference matching the PyTorch forward."""
    w1, b1, w2, b2, w3, b3 = params
    h1 = jnp.maximum(x @ w1 + b1, 0.0)
    h2 = jnp.maximum(h1 @ w2 + b2, 0.0)
    return jax.nn.softmax(h2 @ w3 + b3, axis=-1)


if __name__ == "__main__":
    key = jax.random.PRNGKey(0)
    k_x, k_p = jax.random.split(key)

    batch = 8
    x = jax.random.normal(k_x, (batch, IN_F), dtype=jnp.float32)

    params = init_params(k_p)
    slab = pack_params(*params)

    out = jax.block_until_ready(ann_forward(x, slab))

    # Sanity: shape, softmax rows sum to ~1, matches pure-JAX reference
    # (loose tolerance because MXU operands are bf16; accumulation is f32).
    assert out.shape == (batch, N_CLASSES)
    assert bool(jnp.all(jnp.abs(jnp.sum(out, axis=-1) - 1.0) < 1e-4))
    ref = ann_reference(x, params)
    assert bool(jnp.max(jnp.abs(out - ref)) < 5e-2)

    print("KERNEL_OK")
</pallas_src>

<mosaic_0001>
module attributes {stable_mosaic.version = 11 : i64} {
  func.func @ann_kernel(%arg0: i32, %arg1: memref<8x4xf32, #tpu.memory_space<vmem>>, %arg2: memref<128x128xf32, #tpu.memory_space<vmem>>, %arg3: memref<8x128xf32, #tpu.memory_space<vmem>>) attributes {dimension_semantics = [#tpu.dimension_semantics<parallel>], iteration_bounds = array<i64: 1>, scalar_prefetch = 0 : i64, scratch_operands = 0 : i64, tpu.core_type = #tpu.core_type<tc>, window_params = [{transform_indices = @transform_0, window_bounds = array<i64: 8, 4>}, {pipeline_mode = #tpu.pipeline_mode<synchronous>, transform_indices = @transform_1, window_bounds = array<i64: 128, 128>}, {transform_indices = @transform_2, window_bounds = array<i64: 8, 128>}]} {
    %c0 = arith.constant 0 : index
    %c0_0 = arith.constant 0 : index
    %0 = vector.load %arg1[%c0, %c0_0] : memref<8x4xf32, #tpu.memory_space<vmem>>, vector<8x4xf32>
    %c0_1 = arith.constant 0 : index
    %c0_2 = arith.constant 0 : index
    %1 = vector.load %arg2[%c0_1, %c0_2] : memref<128x128xf32, #tpu.memory_space<vmem>>, vector<4x32xf32>
    %c8 = arith.constant 8 : index
    %c0_3 = arith.constant 0 : index
    %2 = vector.load %arg2[%c8, %c0_3] : memref<128x128xf32, #tpu.memory_space<vmem>>, vector<1x32xf32>
    %c16 = arith.constant 16 : index
    %c0_4 = arith.constant 0 : index
    %3 = vector.load %arg2[%c16, %c0_4] : memref<128x128xf32, #tpu.memory_space<vmem>>, vector<32x64xf32>
    %c48 = arith.constant 48 : index
    %c0_5 = arith.constant 0 : index
    %4 = vector.load %arg2[%c48, %c0_5] : memref<128x128xf32, #tpu.memory_space<vmem>>, vector<1x64xf32>
    %c56 = arith.constant 56 : index
    %c0_6 = arith.constant 0 : index
    %5 = vector.load %arg2[%c56, %c0_6] : memref<128x128xf32, #tpu.memory_space<vmem>>, vector<64x128xf32>
    %c120 = arith.constant 120 : index
    %c0_7 = arith.constant 0 : index
    %6 = vector.load %arg2[%c120, %c0_7] : memref<128x128xf32, #tpu.memory_space<vmem>>, vector<1x128xf32>
    %7 = arith.truncf %0 : vector<8x4xf32> to vector<8x4xbf16>
    %8 = arith.truncf %1 : vector<4x32xf32> to vector<4x32xbf16>
    %cst = arith.constant dense<0.000000e+00> : vector<8x32xf32>
    %9 = tpu.matmul %7, %8, %cst {dimension_numbers = #tpu.dot_dimension_numbers<[1], [0], [0], [1], [0, 0, 1, 1], [], []>} : vector<8x4xbf16>, vector<4x32xbf16>, vector<8x32xf32> -> vector<8x32xf32>
    %10 = vector.broadcast %2 : vector<1x32xf32> to vector<8x32xf32>
    %11 = arith.addf %9, %10 : vector<8x32xf32>
    %cst_8 = arith.constant 0.000000e+00 : f32
    %12 = vector.broadcast %cst_8 : f32 to vector<8x32xf32>
    %13 = arith.maximumf %11, %12 : vector<8x32xf32>
    %14 = arith.truncf %13 : vector<8x32xf32> to vector<8x32xbf16>
    %15 = arith.truncf %3 : vector<32x64xf32> to vector<32x64xbf16>
    %cst_9 = arith.constant dense<0.000000e+00> : vector<8x64xf32>
    %16 = tpu.matmul %14, %15, %cst_9 {dimension_numbers = #tpu.dot_dimension_numbers<[1], [0], [0], [1], [0, 0, 1, 1], [], []>} : vector<8x32xbf16>, vector<32x64xbf16>, vector<8x64xf32> -> vector<8x64xf32>
    %17 = vector.broadcast %4 : vector<1x64xf32> to vector<8x64xf32>
    %18 = arith.addf %16, %17 : vector<8x64xf32>
    %cst_10 = arith.constant 0.000000e+00 : f32
    %19 = vector.broadcast %cst_10 : f32 to vector<8x64xf32>
    %20 = arith.maximumf %18, %19 : vector<8x64xf32>
    %21 = arith.truncf %20 : vector<8x64xf32> to vector<8x64xbf16>
    %22 = arith.truncf %5 : vector<64x128xf32> to vector<64x128xbf16>
    %cst_11 = arith.constant dense<0.000000e+00> : vector<8x128xf32>
    %23 = tpu.matmul %21, %22, %cst_11 {dimension_numbers = #tpu.dot_dimension_numbers<[1], [0], [0], [1], [0, 0, 1, 1], [], []>} : vector<8x64xbf16>, vector<64x128xbf16>, vector<8x128xf32> -> vector<8x128xf32>
    %24 = vector.broadcast %6 : vector<1x128xf32> to vector<8x128xf32>
    %25 = arith.addf %23, %24 : vector<8x128xf32>
    %cst_12 = arith.constant dense<0xFF800000> : vector<8xf32>
    %26 = vector.multi_reduction <maximumf>, %25, %cst_12 [1] : vector<8x128xf32> to vector<8xf32>
    %27 = vector.shape_cast %26 : vector<8xf32> to vector<8x1xf32>
    %28 = vector.broadcast %27 : vector<8x1xf32> to vector<8x128xf32>
    %29 = arith.subf %25, %28 : vector<8x128xf32>
    %30 = math.exp %29 : vector<8x128xf32>
    %cst_13 = arith.constant dense<0.000000e+00> : vector<8xf32>
    %31 = vector.multi_reduction <add>, %30, %cst_13 [1] : vector<8x128xf32> to vector<8xf32>
    %32 = vector.shape_cast %31 : vector<8xf32> to vector<8x1xf32>
    %33 = tpu.reciprocal %32 : vector<8x1xf32> -> vector<8x1xf32>
    %34 = vector.broadcast %33 : vector<8x1xf32> to vector<8x128xf32>
    %35 = arith.mulf %30, %34 : vector<8x128xf32>
    %c0_14 = arith.constant 0 : index
    %c0_15 = arith.constant 0 : index
    %36 = vector.load %arg3[%c0_14, %c0_15] : memref<8x128xf32, #tpu.memory_space<vmem>>, vector<8x128xf32>
    tpu.vector_store %arg3[%c0_14, %c0_15], %35 {strides = array<i32>} : memref<8x128xf32, #tpu.memory_space<vmem>>, vector<8x128xf32>,
    return
  }
  func.func @transform_0(%arg0: i32) -> (i32, i32) {
    %c0_i32 = arith.constant 0 : i32
    %c0_i32_0 = arith.constant 0 : i32
    return %arg0, %c0_i32 : i32, i32
  }
  func.func @transform_1(%arg0: i32) -> (i32, i32) {
    %c0_i32 = arith.constant 0 : i32
    %c0_i32_0 = arith.constant 0 : i32
    %c0_i32_1 = arith.constant 0 : i32
    return %c0_i32, %c0_i32_0 : i32, i32
  }
  func.func @transform_2(%arg0: i32) -> (i32, i32) {
    %c0_i32 = arith.constant 0 : i32
    %c0_i32_0 = arith.constant 0 : i32
    return %arg0, %c0_i32 : i32, i32
  }
}

</mosaic_0001>

<llo_original>
// kernel: tpu_custom_call.1
$region0: #{tpu_custom_call.1}
  #allocation0 [shape = 'u32[]', space=smem, size = 0x4, offset = 0x4, fixed_abs, tag = 'smem constant byte address 0x4 - core index']
  #allocation1 [shape = 'u32[144,128]{1,0:T(1,128)}', space=vmem, size = 0x12000, scoped, tag = 'internal scratch']
  %s0 = inlined_call_operand.vmem [shape: f32[8,4], index: 0, kind: input, shape index: {}]
  %s1 = inlined_call_operand.hbm [shape: f32[128,128], index: 1, kind: input, shape index: {}]
  %s2 = inlined_call_operand.hbm [shape: f32[8,128], index: 2, kind: output, shape index: {}]
  %s3 = sld [smem:[#allocation0]]
  $region22: #{tpu_custom_call.1} parent=0
    _
  %s5 = ssub.s32 1, %s3
  %s6 = scalar_select 0, %s5, %s3
  $region1: #{tpu_custom_call.1} parent=0
    #allocation2 [shape = 'u8[65536]{0}', space=vmem, size = 0x10000, scoped, tag = 'input window, operand 1, single buffered']
    #allocation3 [shape = 's32[1]{0}', space=sflag, size = 0x4, scoped, tag = 'scoped memory for tpu_custom_call.1']
    #allocation4 [shape = 's32[1]{0}', space=sflag, size = 0x4, scoped, tag = 'scoped memory for tpu_custom_call.1']
    #allocation5 [shape = 'u8[4096]{0}', space=vmem, size = 0x1000, scoped, tag = 'output window, operand 0, single buffered']
    %7 = vsyncpa [#allocation3], 0
    %8 = vsyncpa [#allocation4], 0
    // Predicated region
    $region2: #{tpu_custom_call.1} parent=1 // pred_check
      _
    $region3: #{tpu_custom_call.1} parent=1 // pred_check_branch
      %10 = sbr.rel (0) target = $region5
    $region4: #{tpu_custom_call.1} parent=1 // pred_region
      _
    $region5: #{tpu_custom_call.1} parent=1 // pred_fallthru
      _
    // Predicated region
    $region6: #{tpu_custom_call.1} parent=1 // pred_check
      _
    $region7: #{tpu_custom_call.1} parent=1 // pred_check_branch
      %12 = sbr.rel (0) target = $region9
    $region8: #{tpu_custom_call.1} parent=1 // pred_region
      %s14 = ssub.s32 2048, 2048
      %15 = vsyncadd [#allocation3], %s14
      %s16 = sshll.u32 [#allocation2], 4
      %s17 = int_to_ptr.vmem [resolvable:$true] %s16
      %22 = dma.hbm_to_vmem [thread:$0]  %s1, 2048, %s17, [#allocation3], 128, 128, 8
    $region9: #{tpu_custom_call.1} parent=1 // pred_fallthru
      _
    // Predicated region
    $region10: #{tpu_custom_call.1} parent=1 // pred_check
      _
    $region11: #{tpu_custom_call.1} parent=1 // pred_check_branch
      %24 = sbr.rel (0) target = $region13
    $region12: #{tpu_custom_call.1} parent=1 // pred_region
      %25 = dma.done [#allocation3], 2048
    $region13: #{tpu_custom_call.1} parent=1 // pred_fallthru
      _
    %v27 = vld [vmem:[%s0] sm:$0xff]
    %v28 = vld [vmem:[#allocation2] sm:$0xf]
    %v29 = vld [vmem:[#allocation2 + $0x8] sm:$0x1]
    %v30 = vld [vmem:[#allocation2 + $0x10] sm:$0xff]
    %v31 = vld [vmem:[#allocation2 + $0x18] sm:$0xff]
    %v32 = vld [vmem:[#allocation2 + $0x20] sm:$0xff]
    %v33 = vld [vmem:[#allocation2 + $0x28] sm:$0xff]
    %v34 = vld [vmem:[#allocation2 + $0x30] sm:$0x1]
    %v35 = vld [vmem:[#allocation2 + $0x38] sm:$0xff]
    %v36 = vld [vmem:[#allocation2 + $0x40] sm:$0xff]
    %v37 = vld [vmem:[#allocation2 + $0x48] sm:$0xff]
    %v38 = vld [vmem:[#allocation2 + $0x50] sm:$0xff]
    %v39 = vld [vmem:[#allocation2 + $0x58] sm:$0xff]
    %v40 = vld [vmem:[#allocation2 + $0x60] sm:$0xff]
    %v41 = vld [vmem:[#allocation2 + $0x68] sm:$0xff]
    %v42 = vld [vmem:[#allocation2 + $0x70] sm:$0xff]
    %v43 = vld [vmem:[#allocation2 + $0x78] sm:$0x1]
    %v44 = vpack.c.bf16 %v27, %v27
    %v45 = vpack.c.bf16 %v28, %v28
    %v46 = vlaneseq
    %v47 = vshrl.u32 %v46, 7
    %v48 = vsub.s32 0, %v47
    %v49 = vrot.slane %v29, %v48
    %vm50 = vcmask 31744
    %v52 = vsel %vm50, %v44, 0
    %vm54 = vcmask 1041408
    %v56 = vsel %vm54, %v45, 0
    %58 = vmatprep.subr.bf16.mxu0 0
    %59 = vmatpush1.bf16.msra.mxu0 %v56
    %60 = vmatprep.subr.bf16.mxu0 0
    %61 = vmatpush1.bf16.msra.mxu0 0
    %62 = vmatprep.subr.bf16.mxu0 0
    %63 = vmatpush1.bf16.msra.mxu0 0
    %64 = vmatprep.subr.bf16.mxu0 0
    %65 = vmatpush1.bf16.msra.mxu0 0
    %66 = vmatprep.subr.bf16.mxu0 0
    %67 = vmatpush1.bf16.msra.mxu0 0
    %68 = vmatprep.subr.bf16.mxu0 0
    %69 = vmatpush1.bf16.msra.mxu0 0
    %70 = vmatprep.subr.bf16.mxu0 0
    %71 = vmatpush1.bf16.msra.mxu0 0
    %72 = vmatprep.subr.bf16.mxu0 0
    %73 = vmatpush1.bf16.msra.mxu0 0
    %74 = vmatprep.subr.bf16.mxu0 0
    %75 = vmatpush1.bf16.msra.mxu0 0
    %76 = vmatprep.subr.bf16.mxu0 0
    %77 = vmatpush1.bf16.msra.mxu0 0
    %78 = vmatprep.subr.bf16.mxu0 0
    %79 = vmatpush1.bf16.msra.mxu0 0
    %80 = vmatprep.subr.bf16.mxu0 0
    %81 = vmatpush1.bf16.msra.mxu0 0
    %82 = vmatprep.subr.bf16.mxu0 0
    %83 = vmatpush1.bf16.msra.mxu0 0
    %84 = vmatprep.subr.bf16.mxu0 0
    %85 = vmatpush1.bf16.msra.mxu0 0
    %86 = vmatprep.subr.bf16.mxu0 0
    %87 = vmatpush1.bf16.msra.mxu0 0
    %88 = vmatprep.subr.bf16.mxu0 0
    %89 = vmatpush1.bf16.msra.mxu0 0
    %90 = vmatprep.mubr.bf16.mxu0 0
    %91 = vmatmul.mubr.bf16.gmra.mrb[0].mxu0 %v52
    %v92 = vpop.f32.mrb[0].mxu0
    %v93 = vadd.f32 %v49, %v92
    %v94 = vpop.f32.mrb[0].mxu0
    %v95 = vpop.f32.mrb[0].mxu0
    %v96 = vpop.f32.mrb[0].mxu0
    %97 = vdwg.mxu0
    %v98 = vmax.f32 %v93, 0.0
    %v99 = vpack.c.bf16 %v98, %v98
    %v100 = vpack.c.bf16 %v31, %v30
    %v101 = vpack.c.bf16 %v33, %v32
    %v102 = vlaneseq
    %v103 = vshrl.u32 %v102, 7
    %v104 = vsub.s32 0, %v103
    %v105 = vrot.slane %v34, %v104
    %vm106 = vcmask 261120
    %v108 = vsel %vm106, %v99, 0
    %110 = vmatprep.subr.bf16.mxu0 0
    %111 = vmatpush1.bf16.msra.mxu0 %v100
    %112 = vmatprep.subr.bf16.mxu0 0
    %113 = vmatpush1.bf16.msra.mxu0 %v101
    %114 = vmatprep.subr.bf16.mxu0 0
    %115 = vmatpush1.bf16.msra.mxu0 0
    %116 = vmatprep.subr.bf16.mxu0 0
    %117 = vmatpush1.bf16.msra.mxu0 0
    %118 = vmatprep.subr.bf16.mxu0 0
    %119 = vmatpush1.bf16.msra.mxu0 0
    %120 = vmatprep.subr.bf16.mxu0 0
    %121 = vmatpush1.bf16.msra.mxu0 0
    %122 = vmatprep.subr.bf16.mxu0 0
    %123 = vmatpush1.bf16.msra.mxu0 0
    %124 = vmatprep.subr.bf16.mxu0 0
    %125 = vmatpush1.bf16.msra.mxu0 0
    %126 = vmatprep.subr.bf16.mxu0 0
    %127 = vmatpush1.bf16.msra.mxu0 0
    %128 = vmatprep.subr.bf16.mxu0 0
    %129 = vmatpush1.bf16.msra.mxu0 0
    %130 = vmatprep.subr.bf16.mxu0 0
    %131 = vmatpush1.bf16.msra.mxu0 0
    %132 = vmatprep.subr.bf16.mxu0 0
    %133 = vmatpush1.bf16.msra.mxu0 0
    %134 = vmatprep.subr.bf16.mxu0 0
    %135 = vmatpush1.bf16.msra.mxu0 0
    %136 = vmatprep.subr.bf16.mxu0 0
    %137 = vmatpush1.bf16.msra.mxu0 0
    %138 = vmatprep.subr.bf16.mxu0 0
    %139 = vmatpush1.bf16.msra.mxu0 0
    %140 = vmatprep.subr.bf16.mxu0 0
    %141 = vmatpush1.bf16.msra.mxu0 0
    %142 = vmatprep.mubr.bf16.mxu0 0
    %143 = vmatmul.mubr.bf16.gmra.mrb[0].mxu0 %v108
    %v144 = vpop.f32.mrb[0].mxu0
    %v145 = vadd.f32 %v105, %v144
    %v146 = vpop.f32.mrb[0].mxu0
    %v147 = vpop.f32.mrb[0].mxu0
    %v148 = vpop.f32.mrb[0].mxu0
    %149 = vdwg.mxu0
    %v150 = vmax.f32 %v145, 0.0
    %v151 = vpack.c.bf16 %v150, %v150
    %v152 = vpack.c.bf16 %v36, %v35
    %v153 = vpack.c.bf16 %v38, %v37
    %v154 = vpack.c.bf16 %v40, %v39
    %v155 = vpack.c.bf16 %v42, %v41
    %v156 = vlaneseq
    %v157 = vshrl.u32 %v156, 7
    %v158 = vsub.s32 0, %v157
    %v159 = vrot.slane %v43, %v158
    %vm160 = vcmask 523264
    %v162 = vsel %vm160, %v151, 0
    %164 = vmatprep.subr.bf16.mxu0 0
    %165 = vmatpush1.bf16.msra.mxu0 %v152
    %166 = vmatprep.subr.bf16.mxu0 0
    %167 = vmatpush1.bf16.msra.mxu0 %v153
    %168 = vmatprep.subr.bf16.mxu0 0
    %169 = vmatpush1.bf16.msra.mxu0 %v154
    %170 = vmatprep.subr.bf16.mxu0 0
    %171 = vmatpush1.bf16.msra.mxu0 %v155
    %172 = vmatprep.subr.bf16.mxu0 0
    %173 = vmatpush1.bf16.msra.mxu0 0
    %174 = vmatprep.subr.bf16.mxu0 0
    %175 = vmatpush1.bf16.msra.mxu0 0
    %176 = vmatprep.subr.bf16.mxu0 0
    %177 = vmatpush1.bf16.msra.mxu0 0
    %178 = vmatprep.subr.bf16.mxu0 0
    %179 = vmatpush1.bf16.msra.mxu0 0
    %180 = vmatprep.subr.bf16.mxu0 0
    %181 = vmatpush1.bf16.msra.mxu0 0
    %182 = vmatprep.subr.bf16.mxu0 0
    %183 = vmatpush1.bf16.msra.mxu0 0
    %184 = vmatprep.subr.bf16.mxu0 0
    %185 = vmatpush1.bf16.msra.mxu0 0
    %186 = vmatprep.subr.bf16.mxu0 0
    %187 = vmatpush1.bf16.msra.mxu0 0
    %188 = vmatprep.subr.bf16.mxu0 0
    %189 = vmatpush1.bf16.msra.mxu0 0
    %190 = vmatprep.subr.bf16.mxu0 0
    %191 = vmatpush1.bf16.msra.mxu0 0
    %192 = vmatprep.subr.bf16.mxu0 0
    %193 = vmatpush1.bf16.msra.mxu0 0
    %194 = vmatprep.subr.bf16.mxu0 0
    %195 = vmatpush1.bf16.msra.mxu0 0
    %196 = vmatprep.mubr.bf16.mxu0 0
    %197 = vmatmul.mubr.bf16.gmra.mrb[0].mxu0 %v162
    %v198 = vpop.f32.mrb[0].mxu0
    %v199 = vadd.f32 %v159, %v198
    %v200 = vpop.f32.mrb[0].mxu0
    %v201 = vpop.f32.mrb[0].mxu0
    %v202 = vpop.f32.mrb[0].mxu0
    %203 = vdwg.mxu0
    %204 = vmax.xlane.f32.xlu0 %v199
    %v205 = vpop.xlane.xlu0 %204
    %v206 = vsub.f32 %v199, %v205
    %v207 = vmul.f32 %v206, 1.442695
    %v208 = vpow.pop %v207
    %209 = vadd.xlane.f32.xlu0 %v208
    %v210 = vpop.xlane.xlu0 %209
    %v211 = vrcp.pop %v210
    %v212 = vmul.f32 %v208, %v211
    %213 = vst [vmem:[#allocation5] sm:$0xff] %v212
    // Predicated region
    $region14: #{tpu_custom_call.1} parent=1 // pred_check
      _
    $region15: #{tpu_custom_call.1} parent=1 // pred_check_branch
      %215 = sbr.rel (0) target = $region17
    $region16: #{tpu_custom_call.1} parent=1 // pred_region
      %s217 = ssub.s32 128, 128
      %218 = vsyncadd [#allocation4], %s217
      %s220 = sshll.u32 [#allocation5], 4
      %s221 = int_to_ptr.vmem [resolvable:$true] %s220
      %223 = dma.vmem_to_hbm [thread:$0]  %s221, 128, %s2, [#allocation4]
    $region17: #{tpu_custom_call.1} parent=1 // pred_fallthru
      _
    // Predicated region
    $region18: #{tpu_custom_call.1} parent=1 // pred_check
      _
    $region19: #{tpu_custom_call.1} parent=1 // pred_check_branch
      %225 = sbr.rel (0) target = $region21
    $region20: #{tpu_custom_call.1} parent=1 // pred_region
      %226 = dma.done [#allocation4], 128
    $region21: #{tpu_custom_call.1} parent=1 // pred_fallthru
      _
    %227 = vsyncpa [#allocation3], 1
    %228 = vsyncpa [#allocation4], 1

</llo_original>
